<compile_context>
chip_gen: v7x
topology: tpu7x:2x2x1
jax: 0.10.0
libtpu: 0.0.40
codegen_flags: <defaults>
</compile_context>

<pallas_src>
import jax
import jax.numpy as jnp
from jax.experimental import pallas as pl
from jax.experimental.pallas import tpu as pltpu


def _cdiv(a, b):
    return (a + b - 1) // b


def _round_up(a, b):
    return _cdiv(a, b) * b


def _silu(x):
    # x * sigmoid(x); sigmoid(x) = 0.5*tanh(0.5*x) + 0.5  -> one EUP op per vreg.
    return x * (0.5 * jnp.tanh(0.5 * x) + 0.5)


def _silu_ref(x):
    return x * jax.nn.sigmoid(x)


def pointwise_regressor_kernel(
    x_ref,      # (tm, pack*in_dim)        native dtype (cast to bf16 in-kernel)
    g_ref,      # (tm, pack*spacial_dim)   grid coords (kept f32)
    wfx_ref,    # (pack*in_dim, pack*H)    bf16, block-diag replicated
    wfg_ref,    # (pack*sp,     pack*H)    f32,  block-diag replicated
    bfc_ref,    # (1, pack*H)              f32,  tiled
    w1_ref,     # (pack*H, pack*H)         bf16, block-diag
    b1_ref,     # (1, pack*H)              f32
    w2_ref,     # (pack*H, pack*H)         bf16, block-diag
    b2_ref,     # (1, pack*H)              f32
    wout_ref,   # (pack*H, pack*out_dim)   bf16, block-diag
    bout_ref,   # (1, pack*out_dim)        f32
    o_ref,      # (tm, pack*out_dim)       out dtype
):
    cdt = wfx_ref.dtype  # compute dtype (bf16)

    # spacial_fc: h = [x, grid] @ W_fc + b_fc, as a split matmul (no HBM concat).
    # x is cast to bf16 here (VPU, hidden under the matmuls); grid stays f32.
    h = jnp.dot(x_ref[...].astype(cdt), wfx_ref[...],
                preferred_element_type=jnp.float32)
    if g_ref.shape[1] == 1:
        # K=1 grid contribution as a VPU broadcast multiply-add; keeps the MXU free.
        h = h + g_ref[...].astype(jnp.float32) * wfg_ref[...]
    else:
        h = h + jnp.dot(g_ref[...].astype(jnp.float32), wfg_ref[...],
                        preferred_element_type=jnp.float32)
    h = h + bfc_ref[...]

    # ff layer 1: Linear + SiLU   (dropout is identity in eval mode)
    h = _silu(jnp.dot(h.astype(cdt), w1_ref[...],
                      preferred_element_type=jnp.float32) + b1_ref[...])

    # ff layer 2: Linear + SiLU
    h = _silu(jnp.dot(h.astype(cdt), w2_ref[...],
                      preferred_element_type=jnp.float32) + b2_ref[...])

    # output projection
    out = jnp.dot(h.astype(cdt), wout_ref[...],
                  preferred_element_type=jnp.float32) + bout_ref[...]
    o_ref[...] = out.astype(o_ref.dtype)

    # TODO(synk): training-mode dropout (stochastic masking via pltpu.prng_*) not
    # implemented; eval-mode dropout is an identity and is reproduced exactly.


def pointwise_regressor(x, grid, params, *, tm=2048, compute_dtype=jnp.bfloat16,
                        vmem_limit_bytes=32 * 1024 * 1024):
    """x: (B, N, in_dim), grid: (B, N, spacial_dim) -> (B, N, out_dim)."""
    B, N, in_dim = x.shape
    sp_dim = grid.shape[-1]
    w_fc = params["w_fc"]
    n_hidden = w_fc.shape[1]
    out_dim = params["w_out"].shape[1]
    out_dtype = x.dtype

    M = B * N

    # Lane fold: pack `pack` consecutive rows into the 128-lane axis so hidden
    # activations are lane-dense (H=32 -> pack=4).  Zero-copy row-major reshapes of
    # x / grid / output; weights replicated block-diagonally (tiny, built once).
    pack = 1
    if n_hidden < 128 and 128 % n_hidden == 0 and M % (128 // n_hidden) == 0:
        pack = 128 // n_hidden
    Mp = M // pack

    x_p = x.reshape(Mp, pack * in_dim)          # contiguous row-major reshape
    g_p = grid.reshape(Mp, pack * sp_dim)

    if pack > 1:
        eye = jnp.eye(pack, dtype=jnp.float32)
        bdiag = lambda w: jnp.kron(eye, w)      # block-diagonal replication
        btile = lambda b: jnp.tile(b, (1, pack))
    else:
        bdiag = lambda w: w
        btile = lambda b: b

    # Split the spacial_fc weight instead of concatenating [x, grid] in HBM.
    w_fc_x = bdiag(w_fc[:in_dim]).astype(compute_dtype)
    w_fc_g = bdiag(w_fc[in_dim:]).astype(jnp.float32)
    w1 = bdiag(params["w_ff1"]).astype(compute_dtype)
    w2 = bdiag(params["w_ff2"]).astype(compute_dtype)
    wo = bdiag(params["w_out"]).astype(compute_dtype)
    b_fc = btile(params["b_fc"]).astype(jnp.float32)
    b1 = btile(params["b_ff1"]).astype(jnp.float32)
    b2 = btile(params["b_ff2"]).astype(jnp.float32)
    bo = btile(params["b_out"]).astype(jnp.float32)

    # Row tile (in packed rows): large to amortize per-grid-step overhead, capped at
    # ceil(Mp/2) so the parallel axis has >= 2 steps whenever possible (v7x has 2 TCs).
    # Ragged last block is handled by Pallas (masked edge writes) -> no padding pass.
    if Mp <= 8:
        tm_eff = Mp
    else:
        tm_eff = max(8, min(_round_up(tm, 8), _round_up(_cdiv(Mp, 2), 8)))
    n_steps = _cdiv(Mp, tm_eff)

    rows = lambda i: (i, 0)
    full = lambda i: (0, 0)   # constant index map: block fetched once, not per tile

    out_p = pl.pallas_call(
        pointwise_regressor_kernel,
        out_shape=jax.ShapeDtypeStruct((Mp, pack * out_dim), out_dtype),
        grid_spec=pltpu.PrefetchScalarGridSpec(
            num_scalar_prefetch=0,
            grid=(n_steps,),
            in_specs=[
                pl.BlockSpec((tm_eff, pack * in_dim), rows),
                pl.BlockSpec((tm_eff, pack * sp_dim), rows),
                pl.BlockSpec(w_fc_x.shape, full),
                pl.BlockSpec(w_fc_g.shape, full),
                pl.BlockSpec(b_fc.shape, full),
                pl.BlockSpec(w1.shape, full),
                pl.BlockSpec(b1.shape, full),
                pl.BlockSpec(w2.shape, full),
                pl.BlockSpec(b2.shape, full),
                pl.BlockSpec(wo.shape, full),
                pl.BlockSpec(bo.shape, full),
            ],
            out_specs=pl.BlockSpec((tm_eff, pack * out_dim), rows),
        ),
        compiler_params=pltpu.CompilerParams(
            dimension_semantics=("parallel",),
            vmem_limit_bytes=vmem_limit_bytes,
        ),
    )(
        x_p, g_p,
        w_fc_x, w_fc_g, b_fc,
        w1, b1,
        w2, b2,
        wo, bo,
    )
    # (Mp, pack*out_dim) row-major == (M, out_dim) row-major.
    return out_p.reshape(B, N, out_dim)


def init_params(key, in_dim, spacial_dim, n_hidden, out_dim):
    """Deterministic xavier-uniform-like init. Weights stored as (in, out) so the
    kernel computes x @ W + b (equivalent to PyTorch's x @ W.T + b with W=(out,in))."""
    ks = jax.random.split(key, 8)
    in_tot = in_dim + spacial_dim

    def xavier(k, fan_in, fan_out):
        bound = (6.0 / (fan_in + fan_out)) ** 0.5
        return jax.random.uniform(k, (fan_in, fan_out), jnp.float32, -bound, bound)

    return {
        "w_fc":  xavier(ks[0], in_tot, n_hidden),
        "b_fc":  jax.random.uniform(ks[1], (1, n_hidden), jnp.float32, -0.1, 0.1),
        "w_ff1": xavier(ks[2], n_hidden, n_hidden),
        "b_ff1": jax.random.uniform(ks[3], (1, n_hidden), jnp.float32, -0.1, 0.1),
        "w_ff2": xavier(ks[4], n_hidden, n_hidden),
        "b_ff2": jax.random.uniform(ks[5], (1, n_hidden), jnp.float32, -0.1, 0.1),
        "w_out": xavier(ks[6], n_hidden, out_dim),
        "b_out": jax.random.uniform(ks[7], (1, out_dim), jnp.float32, -0.1, 0.1),
    }


def reference_forward(x, grid, p):
    """Pure-JAX f32 reference of the PyTorch module (eval mode)."""
    h = jnp.concatenate([x, grid], axis=-1)
    h = h @ p["w_fc"] + p["b_fc"]
    h = _silu_ref(h @ p["w_ff1"] + p["b_ff1"])
    h = _silu_ref(h @ p["w_ff2"] + p["b_ff2"])
    return h @ p["w_out"] + p["b_out"]


if __name__ == "__main__":
    # Module hyperparameters (small, consistent with the 1D forward signature).
    in_dim, spacial_dim = 4, 1
    n_hidden, out_dim = 32, 2

    key = jax.random.PRNGKey(0)
    kp, kx1, kg1, kx2, kg2, kx3, kg3 = jax.random.split(key, 7)
    params = init_params(kp, in_dim, spacial_dim, n_hidden, out_dim)

    # Tolerances account for the bf16 activation/weight cast (f32 accumulation).
    ATOL, RTOL = 5e-2, 2e-2

    def check(name, B, N, kx, kg, **kw):
        x = jax.random.normal(kx, (B, N, in_dim), jnp.float32)
        g = jax.random.uniform(kg, (B, N, spacial_dim), jnp.float32)
        out = jax.block_until_ready(pointwise_regressor(x, g, params, **kw))
        ref = reference_forward(x, g, params)
        assert out.shape == (B, N, out_dim), f"shape mismatch ({name})"
        assert jnp.allclose(out, ref, atol=ATOL, rtol=RTOL), f"mismatch vs reference ({name})"

    # Case 1: tiny module-consistent shape. M=32 -> pack=4, Mp=8, single grid step.
    check("case1", 2, 16, kx1, kg1)

    # Case 2: M=400 -> pack=4, Mp=100, tile capped to 56 -> 2 grid steps with a ragged
    # (masked) last block.
    check("case2", 2, 200, kx2, kg2)

    # Case 3: M=50 (not divisible by 4) -> lane-fold falls back to pack=1; still uses
    # the cdiv grid + ragged last block path.
    check("case3", 1, 50, kx3, kg3)

    print("KERNEL_OK")
</pallas_src>

<mosaic_0001>
module attributes {stable_mosaic.version = 11 : i64} {
  func.func @pointwise_regressor_kernel(%arg0: i32, %arg1: memref<8x16xf32, #tpu.memory_space<vmem>>, %arg2: memref<8x4xf32, #tpu.memory_space<vmem>>, %arg3: memref<16x128xbf16, #tpu.memory_space<vmem>>, %arg4: memref<4x128xf32, #tpu.memory_space<vmem>>, %arg5: memref<1x128xf32, #tpu.memory_space<vmem>>, %arg6: memref<128x128xbf16, #tpu.memory_space<vmem>>, %arg7: memref<1x128xf32, #tpu.memory_space<vmem>>, %arg8: memref<128x128xbf16, #tpu.memory_space<vmem>>, %arg9: memref<1x128xf32, #tpu.memory_space<vmem>>, %arg10: memref<128x8xbf16, #tpu.memory_space<vmem>>, %arg11: memref<1x8xf32, #tpu.memory_space<vmem>>, %arg12: memref<8x8xf32, #tpu.memory_space<vmem>>) attributes {dimension_semantics = [#tpu.dimension_semantics<parallel>], iteration_bounds = array<i64: 1>, scalar_prefetch = 0 : i64, scratch_operands = 0 : i64, tpu.core_type = #tpu.core_type<tc>, window_params = [{transform_indices = @transform_0, window_bounds = array<i64: 8, 16>}, {transform_indices = @transform_1, window_bounds = array<i64: 8, 4>}, {pipeline_mode = #tpu.pipeline_mode<synchronous>, transform_indices = @transform_2, window_bounds = array<i64: 16, 128>}, {pipeline_mode = #tpu.pipeline_mode<synchronous>, transform_indices = @transform_3, window_bounds = array<i64: 4, 128>}, {pipeline_mode = #tpu.pipeline_mode<synchronous>, transform_indices = @transform_4, window_bounds = array<i64: 1, 128>}, {pipeline_mode = #tpu.pipeline_mode<synchronous>, transform_indices = @transform_5, window_bounds = array<i64: 128, 128>}, {pipeline_mode = #tpu.pipeline_mode<synchronous>, transform_indices = @transform_6, window_bounds = array<i64: 1, 128>}, {pipeline_mode = #tpu.pipeline_mode<synchronous>, transform_indices = @transform_7, window_bounds = array<i64: 128, 128>}, {pipeline_mode = #tpu.pipeline_mode<synchronous>, transform_indices = @transform_8, window_bounds = array<i64: 1, 128>}, {pipeline_mode = #tpu.pipeline_mode<synchronous>, transform_indices = @transform_9, window_bounds = array<i64: 128, 8>}, {pipeline_mode = #tpu.pipeline_mode<synchronous>, transform_indices = @transform_10, window_bounds = array<i64: 1, 8>}, {transform_indices = @transform_11, window_bounds = array<i64: 8, 8>}]} {
    %c0 = arith.constant 0 : index
    %c0_0 = arith.constant 0 : index
    %0 = vector.load %arg1[%c0, %c0_0] : memref<8x16xf32, #tpu.memory_space<vmem>>, vector<8x16xf32>
    %1 = arith.truncf %0 : vector<8x16xf32> to vector<8x16xbf16>
    %c0_1 = arith.constant 0 : index
    %c0_2 = arith.constant 0 : index
    %2 = vector.load %arg3[%c0_1, %c0_2] : memref<16x128xbf16, #tpu.memory_space<vmem>>, vector<16x128xbf16>
    %cst = arith.constant dense<0.000000e+00> : vector<8x128xf32>
    %3 = tpu.matmul %1, %2, %cst {dimension_numbers = #tpu.dot_dimension_numbers<[1], [0], [0], [1], [0, 0, 1, 1], [], []>} : vector<8x16xbf16>, vector<16x128xbf16>, vector<8x128xf32> -> vector<8x128xf32>
    %c0_3 = arith.constant 0 : index
    %c0_4 = arith.constant 0 : index
    %4 = vector.load %arg2[%c0_3, %c0_4] : memref<8x4xf32, #tpu.memory_space<vmem>>, vector<8x4xf32>
    %c0_5 = arith.constant 0 : index
    %c0_6 = arith.constant 0 : index
    %5 = vector.load %arg4[%c0_5, %c0_6] : memref<4x128xf32, #tpu.memory_space<vmem>>, vector<4x128xf32>
    %cst_7 = arith.constant dense<0.000000e+00> : vector<8x128xf32>
    %6 = tpu.matmul %4, %5, %cst_7 {dimension_numbers = #tpu.dot_dimension_numbers<[1], [0], [0], [1], [0, 0, 1, 1], [], []>} : vector<8x4xf32>, vector<4x128xf32>, vector<8x128xf32> -> vector<8x128xf32>
    %7 = arith.addf %3, %6 : vector<8x128xf32>
    %c0_8 = arith.constant 0 : index
    %c0_9 = arith.constant 0 : index
    %8 = vector.load %arg5[%c0_8, %c0_9] : memref<1x128xf32, #tpu.memory_space<vmem>>, vector<1x128xf32>
    %9 = vector.broadcast %8 : vector<1x128xf32> to vector<8x128xf32>
    %10 = arith.addf %7, %9 : vector<8x128xf32>
    %11 = arith.truncf %10 : vector<8x128xf32> to vector<8x128xbf16>
    %c0_10 = arith.constant 0 : index
    %c0_11 = arith.constant 0 : index
    %12 = vector.load %arg6[%c0_10, %c0_11] : memref<128x128xbf16, #tpu.memory_space<vmem>>, vector<128x128xbf16>
    %cst_12 = arith.constant dense<0.000000e+00> : vector<8x128xf32>
    %13 = tpu.matmul %11, %12, %cst_12 {dimension_numbers = #tpu.dot_dimension_numbers<[1], [0], [0], [1], [0, 0, 1, 1], [], []>} : vector<8x128xbf16>, vector<128x128xbf16>, vector<8x128xf32> -> vector<8x128xf32>
    %c0_13 = arith.constant 0 : index
    %c0_14 = arith.constant 0 : index
    %14 = vector.load %arg7[%c0_13, %c0_14] : memref<1x128xf32, #tpu.memory_space<vmem>>, vector<1x128xf32>
    %15 = vector.broadcast %14 : vector<1x128xf32> to vector<8x128xf32>
    %16 = arith.addf %13, %15 : vector<8x128xf32>
    %cst_15 = arith.constant 5.000000e-01 : f32
    %17 = vector.broadcast %cst_15 : f32 to vector<8x128xf32>
    %18 = arith.mulf %17, %16 : vector<8x128xf32>
    %19 = math.tanh %18 : vector<8x128xf32>
    %cst_16 = arith.constant 5.000000e-01 : f32
    %20 = vector.broadcast %cst_16 : f32 to vector<8x128xf32>
    %21 = arith.mulf %20, %19 : vector<8x128xf32>
    %cst_17 = arith.constant 5.000000e-01 : f32
    %22 = vector.broadcast %cst_17 : f32 to vector<8x128xf32>
    %23 = arith.addf %21, %22 : vector<8x128xf32>
    %24 = arith.mulf %16, %23 : vector<8x128xf32>
    %25 = arith.truncf %24 : vector<8x128xf32> to vector<8x128xbf16>
    %c0_18 = arith.constant 0 : index
    %c0_19 = arith.constant 0 : index
    %26 = vector.load %arg8[%c0_18, %c0_19] : memref<128x128xbf16, #tpu.memory_space<vmem>>, vector<128x128xbf16>
    %cst_20 = arith.constant dense<0.000000e+00> : vector<8x128xf32>
    %27 = tpu.matmul %25, %26, %cst_20 {dimension_numbers = #tpu.dot_dimension_numbers<[1], [0], [0], [1], [0, 0, 1, 1], [], []>} : vector<8x128xbf16>, vector<128x128xbf16>, vector<8x128xf32> -> vector<8x128xf32>
    %c0_21 = arith.constant 0 : index
    %c0_22 = arith.constant 0 : index
    %28 = vector.load %arg9[%c0_21, %c0_22] : memref<1x128xf32, #tpu.memory_space<vmem>>, vector<1x128xf32>
    %29 = vector.broadcast %28 : vector<1x128xf32> to vector<8x128xf32>
    %30 = arith.addf %27, %29 : vector<8x128xf32>
    %cst_23 = arith.constant 5.000000e-01 : f32
    %31 = vector.broadcast %cst_23 : f32 to vector<8x128xf32>
    %32 = arith.mulf %31, %30 : vector<8x128xf32>
    %33 = math.tanh %32 : vector<8x128xf32>
    %cst_24 = arith.constant 5.000000e-01 : f32
    %34 = vector.broadcast %cst_24 : f32 to vector<8x128xf32>
    %35 = arith.mulf %34, %33 : vector<8x128xf32>
    %cst_25 = arith.constant 5.000000e-01 : f32
    %36 = vector.broadcast %cst_25 : f32 to vector<8x128xf32>
    %37 = arith.addf %35, %36 : vector<8x128xf32>
    %38 = arith.mulf %30, %37 : vector<8x128xf32>
    %39 = arith.truncf %38 : vector<8x128xf32> to vector<8x128xbf16>
    %c0_26 = arith.constant 0 : index
    %c0_27 = arith.constant 0 : index
    %40 = vector.load %arg10[%c0_26, %c0_27] : memref<128x8xbf16, #tpu.memory_space<vmem>>, vector<128x8xbf16>
    %cst_28 = arith.constant dense<0.000000e+00> : vector<8x8xf32>
    %41 = tpu.matmul %39, %40, %cst_28 {dimension_numbers = #tpu.dot_dimension_numbers<[1], [0], [0], [1], [0, 0, 1, 1], [], []>} : vector<8x128xbf16>, vector<128x8xbf16>, vector<8x8xf32> -> vector<8x8xf32>
    %c0_29 = arith.constant 0 : index
    %c0_30 = arith.constant 0 : index
    %42 = vector.load %arg11[%c0_29, %c0_30] : memref<1x8xf32, #tpu.memory_space<vmem>>, vector<1x8xf32>
    %43 = vector.broadcast %42 : vector<1x8xf32> to vector<8x8xf32>
    %44 = arith.addf %41, %43 : vector<8x8xf32>
    %c0_31 = arith.constant 0 : index
    %c0_32 = arith.constant 0 : index
    %45 = vector.load %arg12[%c0_31, %c0_32] : memref<8x8xf32, #tpu.memory_space<vmem>>, vector<8x8xf32>
    tpu.vector_store %arg12[%c0_31, %c0_32], %44 {strides = array<i32>} : memref<8x8xf32, #tpu.memory_space<vmem>>, vector<8x8xf32>,
    return
  }
  func.func @transform_0(%arg0: i32) -> (i32, i32) {
    %c0_i32 = arith.constant 0 : i32
    %c0_i32_0 = arith.constant 0 : i32
    return %arg0, %c0_i32 : i32, i32
  }
  func.func @transform_1(%arg0: i32) -> (i32, i32) {
    %c0_i32 = arith.constant 0 : i32
    %c0_i32_0 = arith.constant 0 : i32
    return %arg0, %c0_i32 : i32, i32
  }
  func.func @transform_2(%arg0: i32) -> (i32, i32) {
    %c0_i32 = arith.constant 0 : i32
    %c0_i32_0 = arith.constant 0 : i32
    %c0_i32_1 = arith.constant 0 : i32
    return %c0_i32, %c0_i32_0 : i32, i32
  }
  func.func @transform_3(%arg0: i32) -> (i32, i32) {
    %c0_i32 = arith.constant 0 : i32
    %c0_i32_0 = arith.constant 0 : i32
    %c0_i32_1 = arith.constant 0 : i32
    return %c0_i32, %c0_i32_0 : i32, i32
  }
  func.func @transform_4(%arg0: i32) -> (i32, i32) {
    %c0_i32 = arith.constant 0 : i32
    %c0_i32_0 = arith.constant 0 : i32
    %c0_i32_1 = arith.constant 0 : i32
    return %c0_i32, %c0_i32_0 : i32, i32
  }
  func.func @transform_5(%arg0: i32) -> (i32, i32) {
    %c0_i32 = arith.constant 0 : i32
    %c0_i32_0 = arith.constant 0 : i32
    %c0_i32_1 = arith.constant 0 : i32
    return %c0_i32, %c0_i32_0 : i32, i32
  }
  func.func @transform_6(%arg0: i32) -> (i32, i32) {
    %c0_i32 = arith.constant 0 : i32
    %c0_i32_0 = arith.constant 0 : i32
    %c0_i32_1 = arith.constant 0 : i32
    return %c0_i32, %c0_i32_0 : i32, i32
  }
  func.func @transform_7(%arg0: i32) -> (i32, i32) {
    %c0_i32 = arith.constant 0 : i32
    %c0_i32_0 = arith.constant 0 : i32
    %c0_i32_1 = arith.constant 0 : i32
    return %c0_i32, %c0_i32_0 : i32, i32
  }
  func.func @transform_8(%arg0: i32) -> (i32, i32) {
    %c0_i32 = arith.constant 0 : i32
    %c0_i32_0 = arith.constant 0 : i32
    %c0_i32_1 = arith.constant 0 : i32
    return %c0_i32, %c0_i32_0 : i32, i32
  }
  func.func @transform_9(%arg0: i32) -> (i32, i32) {
    %c0_i32 = arith.constant 0 : i32
    %c0_i32_0 = arith.constant 0 : i32
    %c0_i32_1 = arith.constant 0 : i32
    return %c0_i32, %c0_i32_0 : i32, i32
  }
  func.func @transform_10(%arg0: i32) -> (i32, i32) {
    %c0_i32 = arith.constant 0 : i32
    %c0_i32_0 = arith.constant 0 : i32
    %c0_i32_1 = arith.constant 0 : i32
    return %c0_i32, %c0_i32_0 : i32, i32
  }
  func.func @transform_11(%arg0: i32) -> (i32, i32) {
    %c0_i32 = arith.constant 0 : i32
    %c0_i32_0 = arith.constant 0 : i32
    return %arg0, %c0_i32 : i32, i32
  }
}

</mosaic_0001>

<llo_original>
// kernel: tpu_custom_call.1
$region0: #{tpu_custom_call.1}
  #allocation0 [shape = 'u32[]', space=smem, size = 0x4, offset = 0x4, fixed_abs, tag = 'smem constant byte address 0x4 - core index']
  #allocation1 [shape = 'u32[144,128]{1,0:T(1,128)}', space=vmem, size = 0x12000, scoped, tag = 'internal scratch']
  %s0 = inlined_call_operand.vmem [shape: f32[8,16], index: 0, kind: input, shape index: {}]
  %s1 = inlined_call_operand.vmem [shape: f32[8,4], index: 1, kind: input, shape index: {}]
  %s2 = inlined_call_operand.vmem [shape: bf16[16,128], index: 2, kind: input, shape index: {}]
  %s3 = inlined_call_operand.vmem [shape: f32[4,128], index: 3, kind: input, shape index: {}]
  %s4 = inlined_call_operand.vmem [shape: f32[1,128], index: 4, kind: input, shape index: {}]
  %s5 = inlined_call_operand.vmem [shape: bf16[128,128], index: 5, kind: input, shape index: {}]
  %s6 = inlined_call_operand.vmem [shape: f32[1,128], index: 6, kind: input, shape index: {}]
  %s7 = inlined_call_operand.hbm [shape: bf16[128,128], index: 7, kind: input, shape index: {}]
  %s8 = inlined_call_operand.vmem [shape: f32[1,128], index: 8, kind: input, shape index: {}]
  %s9 = inlined_call_operand.vmem [shape: bf16[128,8], index: 9, kind: input, shape index: {}]
  %s10 = inlined_call_operand.vmem [shape: f32[1,8], index: 10, kind: input, shape index: {}]
  %s11 = inlined_call_operand.hbm [shape: f32[8,8], index: 11, kind: output, shape index: {}]
  %s12 = sld [smem:[#allocation0]]
  $region58: #{tpu_custom_call.1} parent=0
    _
  %s14 = ssub.s32 1, %s12
  %s15 = scalar_select 0, %s14, %s12
  $region1: #{tpu_custom_call.1} parent=0
    #allocation2 [shape = 'u8[32768]{0}', space=vmem, size = 0x8000, scoped, tag = 'input window, operand 7, single buffered']
    #allocation3 [shape = 's32[1]{0}', space=sflag, size = 0x4, scoped, tag = 'scoped memory for tpu_custom_call.1']
    #allocation4 [shape = 's32[1]{0}', space=sflag, size = 0x4, scoped, tag = 'scoped memory for tpu_custom_call.1']
    #allocation5 [shape = 'u8[4096]{0}', space=vmem, size = 0x1000, scoped, tag = 'output window, operand 0, single buffered']
    %16 = vsyncpa [#allocation3], 0
    %17 = vsyncpa [#allocation4], 0
    // Predicated region
    $region2: #{tpu_custom_call.1} parent=1 // pred_check
      _
    $region3: #{tpu_custom_call.1} parent=1 // pred_check_branch
      %19 = sbr.rel (0) target = $region5
    $region4: #{tpu_custom_call.1} parent=1 // pred_region
      _
    $region5: #{tpu_custom_call.1} parent=1 // pred_fallthru
      _
    // Predicated region
    $region6: #{tpu_custom_call.1} parent=1 // pred_check
      _
    $region7: #{tpu_custom_call.1} parent=1 // pred_check_branch
      %21 = sbr.rel (0) target = $region9
    $region8: #{tpu_custom_call.1} parent=1 // pred_region
      _
    $region9: #{tpu_custom_call.1} parent=1 // pred_fallthru
      _
    // Predicated region
    $region10: #{tpu_custom_call.1} parent=1 // pred_check
      _
    $region11: #{tpu_custom_call.1} parent=1 // pred_check_branch
      %23 = sbr.rel (0) target = $region13
    $region12: #{tpu_custom_call.1} parent=1 // pred_region
      _
    $region13: #{tpu_custom_call.1} parent=1 // pred_fallthru
      _
    // Predicated region
    $region14: #{tpu_custom_call.1} parent=1 // pred_check
      _
    $region15: #{tpu_custom_call.1} parent=1 // pred_check_branch
      %25 = sbr.rel (0) target = $region17
    $region16: #{tpu_custom_call.1} parent=1 // pred_region
      _
    $region17: #{tpu_custom_call.1} parent=1 // pred_fallthru
      _
    // Predicated region
    $region18: #{tpu_custom_call.1} parent=1 // pred_check
      _
    $region19: #{tpu_custom_call.1} parent=1 // pred_check_branch
      %27 = sbr.rel (0) target = $region21
    $region20: #{tpu_custom_call.1} parent=1 // pred_region
      _
    $region21: #{tpu_custom_call.1} parent=1 // pred_fallthru
      _
    // Predicated region
    $region22: #{tpu_custom_call.1} parent=1 // pred_check
      _
    $region23: #{tpu_custom_call.1} parent=1 // pred_check_branch
      %29 = sbr.rel (0) target = $region25
    $region24: #{tpu_custom_call.1} parent=1 // pred_region
      _
    $region25: #{tpu_custom_call.1} parent=1 // pred_fallthru
      _
    // Predicated region
    $region26: #{tpu_custom_call.1} parent=1 // pred_check
      _
    $region27: #{tpu_custom_call.1} parent=1 // pred_check_branch
      %31 = sbr.rel (0) target = $region29
    $region28: #{tpu_custom_call.1} parent=1 // pred_region
      _
    $region29: #{tpu_custom_call.1} parent=1 // pred_fallthru
      _
    // Predicated region
    $region30: #{tpu_custom_call.1} parent=1 // pred_check
      _
    $region31: #{tpu_custom_call.1} parent=1 // pred_check_branch
      %33 = sbr.rel (0) target = $region33
    $region32: #{tpu_custom_call.1} parent=1 // pred_region
      %s35 = ssub.s32 1024, 1024
      %36 = vsyncadd [#allocation3], %s35
      %s37 = sshll.u32 [#allocation2], 4
      %s38 = int_to_ptr.vmem [resolvable:$true] %s37
      %43 = dma.hbm_to_vmem [thread:$0]  %s7, 1024, %s38, [#allocation3], 64, 64, 4
    $region33: #{tpu_custom_call.1} parent=1 // pred_fallthru
      _
    // Predicated region
    $region34: #{tpu_custom_call.1} parent=1 // pred_check
      _
    $region35: #{tpu_custom_call.1} parent=1 // pred_check_branch
      %45 = sbr.rel (0) target = $region37
    $region36: #{tpu_custom_call.1} parent=1 // pred_region
      _
    $region37: #{tpu_custom_call.1} parent=1 // pred_fallthru
      _
    // Predicated region
    $region38: #{tpu_custom_call.1} parent=1 // pred_check
      _
    $region39: #{tpu_custom_call.1} parent=1 // pred_check_branch
      %47 = sbr.rel (0) target = $region41
    $region40: #{tpu_custom_call.1} parent=1 // pred_region
      _
    $region41: #{tpu_custom_call.1} parent=1 // pred_fallthru
      _
    // Predicated region
    $region42: #{tpu_custom_call.1} parent=1 // pred_check
      _
    $region43: #{tpu_custom_call.1} parent=1 // pred_check_branch
      %49 = sbr.rel (0) target = $region45
    $region44: #{tpu_custom_call.1} parent=1 // pred_region
      _
    $region45: #{tpu_custom_call.1} parent=1 // pred_fallthru
      _
    // Predicated region
    $region46: #{tpu_custom_call.1} parent=1 // pred_check
      _
    $region47: #{tpu_custom_call.1} parent=1 // pred_check_branch
      %51 = sbr.rel (0) target = $region49
    $region48: #{tpu_custom_call.1} parent=1 // pred_region
      %52 = dma.done [#allocation3], 1024
    $region49: #{tpu_custom_call.1} parent=1 // pred_fallthru
      _
    %v54 = vld [vmem:[%s0] sm:$0xff]
    %v55 = vpack.c.bf16 %v54, %v54
    %v56 = vld [vmem:[%s2] sm:$0xf]
    %v57 = vld [vmem:[%s2 + $0x4] sm:$0xf]
    %v58 = vld [vmem:[%s1] sm:$0xff]
    %v59 = vld [vmem:[%s3] sm:$0xf]
    %vm60 = vcmask 31744
    %v62 = vsel %vm60, %v58, 0
    %vm64 = vcmask 1043456
    %v66 = vsel %vm64, %v59, 0
    %68 = vmatprep.subr.mxu0 0.0
    %69 = vmatpush1.msra.mxu0 %v66
    %70 = vmatprep.subr.mxu0 0.0
    %71 = vmatpush1.msra.mxu0 0.0
    %72 = vmatprep.subr.mxu0 0.0
    %73 = vmatpush1.msra.mxu0 0.0
    %74 = vmatprep.subr.mxu0 0.0
    %75 = vmatpush1.msra.mxu0 0.0
    %76 = vmatprep.subr.mxu0 0.0
    %77 = vmatpush1.msra.mxu0 0.0
    %78 = vmatprep.subr.mxu0 0.0
    %79 = vmatpush1.msra.mxu0 0.0
    %80 = vmatprep.subr.mxu0 0.0
    %81 = vmatpush1.msra.mxu0 0.0
    %82 = vmatprep.subr.mxu0 0.0
    %83 = vmatpush1.msra.mxu0 0.0
    %84 = vmatprep.subr.mxu0 0.0
    %85 = vmatpush1.msra.mxu0 0.0
    %86 = vmatprep.subr.mxu0 0.0
    %87 = vmatpush1.msra.mxu0 0.0
    %88 = vmatprep.subr.mxu0 0.0
    %89 = vmatpush1.msra.mxu0 0.0
    %90 = vmatprep.subr.mxu0 0.0
    %91 = vmatpush1.msra.mxu0 0.0
    %92 = vmatprep.subr.mxu0 0.0
    %93 = vmatpush1.msra.mxu0 0.0
    %94 = vmatprep.subr.mxu0 0.0
    %95 = vmatpush1.msra.mxu0 0.0
    %96 = vmatprep.subr.mxu0 0.0
    %97 = vmatpush1.msra.mxu0 0.0
    %98 = vmatprep.subr.mxu0 0.0
    %99 = vmatpush1.msra.mxu0 0.0
    %100 = vmatprep.subr.mxu0 0.0
    %101 = vmatpush1.msra.mxu0 0.0
    %102 = vmatprep.subr.mxu0 0.0
    %103 = vmatpush1.msra.mxu0 0.0
    %104 = vmatprep.subr.mxu0 0.0
    %105 = vmatpush1.msra.mxu0 0.0
    %106 = vmatprep.subr.mxu0 0.0
    %107 = vmatpush1.msra.mxu0 0.0
    %108 = vmatprep.subr.mxu0 0.0
    %109 = vmatpush1.msra.mxu0 0.0
    %110 = vmatprep.subr.mxu0 0.0
    %111 = vmatpush1.msra.mxu0 0.0
    %112 = vmatprep.subr.mxu0 0.0
    %113 = vmatpush1.msra.mxu0 0.0
    %114 = vmatprep.subr.mxu0 0.0
    %115 = vmatpush1.msra.mxu0 0.0
    %116 = vmatprep.subr.mxu0 0.0
    %117 = vmatpush1.msra.mxu0 0.0
    %118 = vmatprep.subr.mxu0 0.0
    %119 = vmatpush1.msra.mxu0 0.0
    %120 = vmatprep.subr.mxu0 0.0
    %121 = vmatpush1.msra.mxu0 0.0
    %122 = vmatprep.subr.mxu0 0.0
    %123 = vmatpush1.msra.mxu0 0.0
    %124 = vmatprep.subr.mxu0 0.0
    %125 = vmatpush1.msra.mxu0 0.0
    %126 = vmatprep.subr.mxu0 0.0
    %127 = vmatpush1.msra.mxu0 0.0
    %128 = vmatprep.subr.mxu0 0.0
    %129 = vmatpush1.msra.mxu0 0.0
    %130 = vmatprep.subr.mxu0 0.0
    %131 = vmatpush1.msra.mxu0 0.0
    %132 = vmatprep.mubr.f32.mxu0 0.0
    %133 = vmatmul.mubr.f32.gmra.mrb[0].mxu0 %v62
    %v134 = vpop.f32.mrb[0].mxu0
    %v135 = vadd.f32 0.0, %v134
    %v136 = vpop.f32.mrb[0].mxu0
    %137 = vdwg.mxu0
    %v140 = vunpack.c.l.b16 %v56
    %v141 = vunpack.c.l.b16 %v57
    %v142 = vpack.c.b16 %v141, %v140
    %vm144 = vcmask 130048
    %v146 = vsel %vm144, %v55, 0
    %148 = vmatprep.subr.bf16.mxu0 0
    %149 = vmatpush1.bf16.msra.mxu0 %v142
    %150 = vmatprep.subr.bf16.mxu0 0
    %151 = vmatpush1.bf16.msra.mxu0 0
    %152 = vmatprep.subr.bf16.mxu0 0
    %153 = vmatpush1.bf16.msra.mxu0 0
    %154 = vmatprep.subr.bf16.mxu0 0
    %155 = vmatpush1.bf16.msra.mxu0 0
    %156 = vmatprep.subr.bf16.mxu0 0
    %157 = vmatpush1.bf16.msra.mxu0 0
    %158 = vmatprep.subr.bf16.mxu0 0
    %159 = vmatpush1.bf16.msra.mxu0 0
    %160 = vmatprep.subr.bf16.mxu0 0
    %161 = vmatpush1.bf16.msra.mxu0 0
    %162 = vmatprep.subr.bf16.mxu0 0
    %163 = vmatpush1.bf16.msra.mxu0 0
    %164 = vmatprep.subr.bf16.mxu0 0
    %165 = vmatpush1.bf16.msra.mxu0 0
    %166 = vmatprep.subr.bf16.mxu0 0
    %167 = vmatpush1.bf16.msra.mxu0 0
    %168 = vmatprep.subr.bf16.mxu0 0
    %169 = vmatpush1.bf16.msra.mxu0 0
    %170 = vmatprep.subr.bf16.mxu0 0
    %171 = vmatpush1.bf16.msra.mxu0 0
    %172 = vmatprep.subr.bf16.mxu0 0
    %173 = vmatpush1.bf16.msra.mxu0 0
    %174 = vmatprep.subr.bf16.mxu0 0
    %175 = vmatpush1.bf16.msra.mxu0 0
    %176 = vmatprep.subr.bf16.mxu0 0
    %177 = vmatpush1.bf16.msra.mxu0 0
    %178 = vmatprep.subr.bf16.mxu0 0
    %179 = vmatpush1.bf16.msra.mxu0 0
    %180 = vmatprep.mubr.bf16.mxu0 0
    %181 = vmatmul.mubr.bf16.gmra.mrb[0].mxu0 %v146
    %v182 = vpop.f32.mrb[0].mxu0
    %v183 = vadd.f32 %v135, %v182
    %v184 = vpop.f32.mrb[0].mxu0
    %v185 = vpop.f32.mrb[0].mxu0
    %v186 = vpop.f32.mrb[0].mxu0
    %187 = vdwg.mxu0
    %v188 = vld [vmem:[%s4] sm:$0x1]
    %v190 = vlaneseq
    %v191 = vshrl.u32 %v190, 7
    %v192 = vsub.s32 0, %v191
    %v193 = vrot.slane %v188, %v192
    %v195 = vadd.f32 %v183, %v193
    %v196 = vpack.c.bf16 %v195, %v195
    %v197 = vld [vmem:[%s5] sm:$0xf]
    %v198 = vld [vmem:[%s5 + $0x4] sm:$0xf]
    %v199 = vld [vmem:[%s5 + $0x8] sm:$0xf]
    %v200 = vld [vmem:[%s5 + $0xc] sm:$0xf]
    %v201 = vld [vmem:[%s5 + $0x10] sm:$0xf]
    %v202 = vld [vmem:[%s5 + $0x14] sm:$0xf]
    %v203 = vld [vmem:[%s5 + $0x18] sm:$0xf]
    %v204 = vld [vmem:[%s5 + $0x1c] sm:$0xf]
    %v205 = vld [vmem:[%s5 + $0x20] sm:$0xf]
    %v206 = vld [vmem:[%s5 + $0x24] sm:$0xf]
    %v207 = vld [vmem:[%s5 + $0x28] sm:$0xf]
    %v208 = vld [vmem:[%s5 + $0x2c] sm:$0xf]
    %v209 = vld [vmem:[%s5 + $0x30] sm:$0xf]
    %v210 = vld [vmem:[%s5 + $0x34] sm:$0xf]
    %v211 = vld [vmem:[%s5 + $0x38] sm:$0xf]
    %v212 = vld [vmem:[%s5 + $0x3c] sm:$0xf]
    %v213 = vld [vmem:[%s6] sm:$0x1]
    %v215 = vlaneseq
    %v216 = vshrl.u32 %v215, 7
    %v217 = vsub.s32 0, %v216
    %v218 = vrot.slane %v213, %v217
    %v236 = vunpack.c.l.b16 %v197
    %v237 = vunpack.c.l.b16 %v198
    %v238 = vunpack.c.l.b16 %v199
    %v239 = vunpack.c.l.b16 %v200
    %v240 = vunpack.c.l.b16 %v201
    %v241 = vunpack.c.l.b16 %v202
    %v242 = vunpack.c.l.b16 %v203
    %v243 = vunpack.c.l.b16 %v204
    %v244 = vunpack.c.l.b16 %v205
    %v245 = vunpack.c.l.b16 %v206
    %v246 = vunpack.c.l.b16 %v207
    %v247 = vunpack.c.l.b16 %v208
    %v248 = vunpack.c.l.b16 %v209
    %v249 = vunpack.c.l.b16 %v210
    %v250 = vunpack.c.l.b16 %v211
    %v251 = vunpack.c.l.b16 %v212
    %v252 = vpack.c.b16 %v237, %v236
    %v253 = vpack.c.b16 %v239, %v238
    %v254 = vpack.c.b16 %v241, %v240
    %v255 = vpack.c.b16 %v243, %v242
    %v256 = vpack.c.b16 %v245, %v244
    %v257 = vpack.c.b16 %v247, %v246
    %v258 = vpack.c.b16 %v249, %v248
    %v259 = vpack.c.b16 %v251, %v250
    %268 = vmatprep.subr.bf16.mxu0 0
    %269 = vmatpush1.bf16.msra.mxu0 %v252
    %270 = vmatprep.subr.bf16.mxu0 0
    %271 = vmatpush1.bf16.msra.mxu0 %v253
    %272 = vmatprep.subr.bf16.mxu0 0
    %273 = vmatpush1.bf16.msra.mxu0 %v254
    %274 = vmatprep.subr.bf16.mxu0 0
    %275 = vmatpush1.bf16.msra.mxu0 %v255
    %276 = vmatprep.subr.bf16.mxu0 0
    %277 = vmatpush1.bf16.msra.mxu0 %v256
    %278 = vmatprep.subr.bf16.mxu0 0
    %279 = vmatpush1.bf16.msra.mxu0 %v257
    %280 = vmatprep.subr.bf16.mxu0 0
    %281 = vmatpush1.bf16.msra.mxu0 %v258
    %282 = vmatprep.subr.bf16.mxu0 0
    %283 = vmatpush1.bf16.msra.mxu0 %v259
    %284 = vmatprep.subr.bf16.mxu0 0
    %285 = vmatpush1.bf16.msra.mxu0 0
    %286 = vmatprep.subr.bf16.mxu0 0
    %287 = vmatpush1.bf16.msra.mxu0 0
    %288 = vmatprep.subr.bf16.mxu0 0
    %289 = vmatpush1.bf16.msra.mxu0 0
    %290 = vmatprep.subr.bf16.mxu0 0
    %291 = vmatpush1.bf16.msra.mxu0 0
    %292 = vmatprep.subr.bf16.mxu0 0
    %293 = vmatpush1.bf16.msra.mxu0 0
    %294 = vmatprep.subr.bf16.mxu0 0
    %295 = vmatpush1.bf16.msra.mxu0 0
    %296 = vmatprep.subr.bf16.mxu0 0
    %297 = vmatpush1.bf16.msra.mxu0 0
    %298 = vmatprep.subr.bf16.mxu0 0
    %299 = vmatpush1.bf16.msra.mxu0 0
    %300 = vmatprep.mubr.bf16.mxu0 0
    %301 = vmatmul.mubr.bf16.gmra.mrb[0].mxu0 %v196
    %v302 = vpop.f32.mrb[0].mxu0
    %v303 = vadd.f32 %v218, %v302
    %v304 = vpop.f32.mrb[0].mxu0
    %v305 = vpop.f32.mrb[0].mxu0
    %v306 = vpop.f32.mrb[0].mxu0
    %307 = vdwg.mxu0
    %v308 = vmul.f32 %v303, 0.5
    %v309 = vtanh.pop %v308
    %v310 = vmul.f32 %v309, 0.5
    %v311 = vadd.f32 %v310, 0.5
    %v312 = vmul.f32 %v303, %v311
    %v313 = vpack.c.bf16 %v312, %v312
    %v314 = vld [vmem:[#allocation2] sm:$0xf]
    %v315 = vld [vmem:[#allocation2 + $0x4] sm:$0xf]
    %v316 = vld [vmem:[#allocation2 + $0x8] sm:$0xf]
    %v317 = vld [vmem:[#allocation2 + $0xc] sm:$0xf]
    %v318 = vld [vmem:[#allocation2 + $0x10] sm:$0xf]
    %v319 = vld [vmem:[#allocation2 + $0x14] sm:$0xf]
    %v320 = vld [vmem:[#allocation2 + $0x18] sm:$0xf]
    %v321 = vld [vmem:[#allocation2 + $0x1c] sm:$0xf]
    %v322 = vld [vmem:[#allocation2 + $0x20] sm:$0xf]
    %v323 = vld [vmem:[#allocation2 + $0x24] sm:$0xf]
    %v324 = vld [vmem:[#allocation2 + $0x28] sm:$0xf]
    %v325 = vld [vmem:[#allocation2 + $0x2c] sm:$0xf]
    %v326 = vld [vmem:[#allocation2 + $0x30] sm:$0xf]
    %v327 = vld [vmem:[#allocation2 + $0x34] sm:$0xf]
    %v328 = vld [vmem:[#allocation2 + $0x38] sm:$0xf]
    %v329 = vld [vmem:[#allocation2 + $0x3c] sm:$0xf]
    %v330 = vld [vmem:[%s8] sm:$0x1]
    %v332 = vlaneseq
    %v333 = vshrl.u32 %v332, 7
    %v334 = vsub.s32 0, %v333
    %v335 = vrot.slane %v330, %v334
    %v353 = vunpack.c.l.b16 %v314
    %v354 = vunpack.c.l.b16 %v315
    %v355 = vunpack.c.l.b16 %v316
    %v356 = vunpack.c.l.b16 %v317
    %v357 = vunpack.c.l.b16 %v318
    %v358 = vunpack.c.l.b16 %v319
    %v359 = vunpack.c.l.b16 %v320
    %v360 = vunpack.c.l.b16 %v321
    %v361 = vunpack.c.l.b16 %v322
    %v362 = vunpack.c.l.b16 %v323
    %v363 = vunpack.c.l.b16 %v324
    %v364 = vunpack.c.l.b16 %v325
    %v365 = vunpack.c.l.b16 %v326
    %v366 = vunpack.c.l.b16 %v327
    %v367 = vunpack.c.l.b16 %v328
    %v368 = vunpack.c.l.b16 %v329
    %v369 = vpack.c.b16 %v354, %v353
    %v370 = vpack.c.b16 %v356, %v355
    %v371 = vpack.c.b16 %v358, %v357
    %v372 = vpack.c.b16 %v360, %v359
    %v373 = vpack.c.b16 %v362, %v361
    %v374 = vpack.c.b16 %v364, %v363
    %v375 = vpack.c.b16 %v366, %v365
    %v376 = vpack.c.b16 %v368, %v367
    %385 = vmatprep.subr.bf16.mxu0 0
    %386 = vmatpush1.bf16.msra.mxu0 %v369
    %387 = vmatprep.subr.bf16.mxu0 0
    %388 = vmatpush1.bf16.msra.mxu0 %v370
    %389 = vmatprep.subr.bf16.mxu0 0
    %390 = vmatpush1.bf16.msra.mxu0 %v371
    %391 = vmatprep.subr.bf16.mxu0 0
    %392 = vmatpush1.bf16.msra.mxu0 %v372
    %393 = vmatprep.subr.bf16.mxu0 0
    %394 = vmatpush1.bf16.msra.mxu0 %v373
    %395 = vmatprep.subr.bf16.mxu0 0
    %396 = vmatpush1.bf16.msra.mxu0 %v374
    %397 = vmatprep.subr.bf16.mxu0 0
    %398 = vmatpush1.bf16.msra.mxu0 %v375
    %399 = vmatprep.subr.bf16.mxu0 0
    %400 = vmatpush1.bf16.msra.mxu0 %v376
    %401 = vmatprep.subr.bf16.mxu0 0
    %402 = vmatpush1.bf16.msra.mxu0 0
    %403 = vmatprep.subr.bf16.mxu0 0
    %404 = vmatpush1.bf16.msra.mxu0 0
    %405 = vmatprep.subr.bf16.mxu0 0
    %406 = vmatpush1.bf16.msra.mxu0 0
    %407 = vmatprep.subr.bf16.mxu0 0
    %408 = vmatpush1.bf16.msra.mxu0 0
    %409 = vmatprep.subr.bf16.mxu0 0
    %410 = vmatpush1.bf16.msra.mxu0 0
    %411 = vmatprep.subr.bf16.mxu0 0
    %412 = vmatpush1.bf16.msra.mxu0 0
    %413 = vmatprep.subr.bf16.mxu0 0
    %414 = vmatpush1.bf16.msra.mxu0 0
    %415 = vmatprep.subr.bf16.mxu0 0
    %416 = vmatpush1.bf16.msra.mxu0 0
    %417 = vmatprep.mubr.bf16.mxu0 0
    %418 = vmatmul.mubr.bf16.gmra.mrb[0].mxu0 %v313
    %v419 = vpop.f32.mrb[0].mxu0
    %v420 = vadd.f32 %v335, %v419
    %v421 = vpop.f32.mrb[0].mxu0
    %v422 = vpop.f32.mrb[0].mxu0
    %v423 = vpop.f32.mrb[0].mxu0
    %424 = vdwg.mxu0
    %v425 = vmul.f32 %v420, 0.5
    %v426 = vtanh.pop %v425
    %v427 = vmul.f32 %v426, 0.5
    %v428 = vadd.f32 %v427, 0.5
    %v429 = vmul.f32 %v420, %v428
    %v430 = vpack.c.bf16 %v429, %v429
    %v431 = vld [vmem:[%s9] sm:$0xf]
    %v432 = vld [vmem:[%s9 + $0x4] sm:$0xf]
    %v433 = vld [vmem:[%s9 + $0x8] sm:$0xf]
    %v434 = vld [vmem:[%s9 + $0xc] sm:$0xf]
    %v435 = vld [vmem:[%s9 + $0x10] sm:$0xf]
    %v436 = vld [vmem:[%s9 + $0x14] sm:$0xf]
    %v437 = vld [vmem:[%s9 + $0x18] sm:$0xf]
    %v438 = vld [vmem:[%s9 + $0x1c] sm:$0xf]
    %v439 = vld [vmem:[%s9 + $0x20] sm:$0xf]
    %v440 = vld [vmem:[%s9 + $0x24] sm:$0xf]
    %v441 = vld [vmem:[%s9 + $0x28] sm:$0xf]
    %v442 = vld [vmem:[%s9 + $0x2c] sm:$0xf]
    %v443 = vld [vmem:[%s9 + $0x30] sm:$0xf]
    %v444 = vld [vmem:[%s9 + $0x34] sm:$0xf]
    %v445 = vld [vmem:[%s9 + $0x38] sm:$0xf]
    %v446 = vld [vmem:[%s9 + $0x3c] sm:$0xf]
    %v447 = vld [vmem:[%s10] sm:$0x1]
    %v449 = vlaneseq
    %v450 = vshrl.u32 %v449, 7
    %v451 = vsub.s32 0, %v450
    %v452 = vrot.slane %v447, %v451
    %v470 = vunpack.c.l.b16 %v431
    %v471 = vunpack.c.l.b16 %v432
    %v472 = vunpack.c.l.b16 %v433
    %v473 = vunpack.c.l.b16 %v434
    %v474 = vunpack.c.l.b16 %v435
    %v475 = vunpack.c.l.b16 %v436
    %v476 = vunpack.c.l.b16 %v437
    %v477 = vunpack.c.l.b16 %v438
    %v478 = vunpack.c.l.b16 %v439
    %v479 = vunpack.c.l.b16 %v440
    %v480 = vunpack.c.l.b16 %v441
    %v481 = vunpack.c.l.b16 %v442
    %v482 = vunpack.c.l.b16 %v443
    %v483 = vunpack.c.l.b16 %v444
    %v484 = vunpack.c.l.b16 %v445
    %v485 = vunpack.c.l.b16 %v446
    %v486 = vpack.c.b16 %v471, %v470
    %v487 = vpack.c.b16 %v473, %v472
    %v488 = vpack.c.b16 %v475, %v474
    %v489 = vpack.c.b16 %v477, %v476
    %v490 = vpack.c.b16 %v479, %v478
    %v491 = vpack.c.b16 %v481, %v480
    %v492 = vpack.c.b16 %v483, %v482
    %v493 = vpack.c.b16 %v485, %v484
    %502 = vmatprep.subr.bf16.mxu0 0
    %503 = vmatpush1.bf16.msra.mxu0 %v486
    %504 = vmatprep.subr.bf16.mxu0 0
    %505 = vmatpush1.bf16.msra.mxu0 %v487
    %506 = vmatprep.subr.bf16.mxu0 0
    %507 = vmatpush1.bf16.msra.mxu0 %v488
    %508 = vmatprep.subr.bf16.mxu0 0
    %509 = vmatpush1.bf16.msra.mxu0 %v489
    %510 = vmatprep.subr.bf16.mxu0 0
    %511 = vmatpush1.bf16.msra.mxu0 %v490
    %512 = vmatprep.subr.bf16.mxu0 0
    %513 = vmatpush1.bf16.msra.mxu0 %v491
    %514 = vmatprep.subr.bf16.mxu0 0
    %515 = vmatpush1.bf16.msra.mxu0 %v492
    %516 = vmatprep.subr.bf16.mxu0 0
    %517 = vmatpush1.bf16.msra.mxu0 %v493
    %518 = vmatprep.subr.bf16.mxu0 0
    %519 = vmatpush1.bf16.msra.mxu0 0
    %520 = vmatprep.subr.bf16.mxu0 0
    %521 = vmatpush1.bf16.msra.mxu0 0
    %522 = vmatprep.subr.bf16.mxu0 0
    %523 = vmatpush1.bf16.msra.mxu0 0
    %524 = vmatprep.subr.bf16.mxu0 0
    %525 = vmatpush1.bf16.msra.mxu0 0
    %526 = vmatprep.subr.bf16.mxu0 0
    %527 = vmatpush1.bf16.msra.mxu0 0
    %528 = vmatprep.subr.bf16.mxu0 0
    %529 = vmatpush1.bf16.msra.mxu0 0
    %530 = vmatprep.subr.bf16.mxu0 0
    %531 = vmatpush1.bf16.msra.mxu0 0
    %532 = vmatprep.subr.bf16.mxu0 0
    %533 = vmatpush1.bf16.msra.mxu0 0
    %534 = vmatprep.mubr.bf16.mxu0 0
    %535 = vmatmul.mubr.bf16.gmra.mrb[0].mxu0 %v430
    %v536 = vpop.f32.mrb[0].mxu0
    %v537 = vadd.f32 %v452, %v536
    %v538 = vpop.f32.mrb[0].mxu0
    %v539 = vpop.f32.mrb[0].mxu0
    %v540 = vpop.f32.mrb[0].mxu0
    %541 = vdwg.mxu0
    %vm542 = vcmask 64512
    %543 = vst.msk [vmem:[#allocation5] sm:$0xff] %vm542, %v537
    // Predicated region
    $region50: #{tpu_custom_call.1} parent=1 // pred_check
      _
    $region51: #{tpu_custom_call.1} parent=1 // pred_check_branch
      %545 = sbr.rel (0) target = $region53
    $region52: #{tpu_custom_call.1} parent=1 // pred_region
      %s547 = ssub.s32 128, 128
      %548 = vsyncadd [#allocation4], %s547
      %s550 = sshll.u32 [#allocation5], 4
      %s551 = int_to_ptr.vmem [resolvable:$true] %s550
      %553 = dma.vmem_to_hbm [thread:$0]  %s551, 128, %s11, [#allocation4]
    $region53: #{tpu_custom_call.1} parent=1 // pred_fallthru
      _
    // Predicated region
    $region54: #{tpu_custom_call.1} parent=1 // pred_check
      _
    $region55: #{tpu_custom_call.1} parent=1 // pred_check_branch
      %555 = sbr.rel (0) target = $region57
    $region56: #{tpu_custom_call.1} parent=1 // pred_region
      %556 = dma.done [#allocation4], 128
    $region57: #{tpu_custom_call.1} parent=1 // pred_fallthru
      _
    %557 = vsyncpa [#allocation3], 1
    %558 = vsyncpa [#allocation4], 1

</llo_original>
